<compile_context>
chip_gen: v6e
topology: v6e:2x2x1
jax: 0.10.0
libtpu: 0.0.40
codegen_flags: <defaults>
</compile_context>

<pallas_src>
import jax
import jax.numpy as jnp
from jax import lax
from jax.experimental import pallas as pl
from jax.experimental.pallas import tpu as pltpu


# -----------------------------------------------------------------------------
# Pre-pass: fused QKV projection — one (s_tile, D) x (D, 3D) matmul, bf16 out.
# -----------------------------------------------------------------------------
def _qkv_proj_kernel(src_ref, wqkv_ref, bqkv_ref, qkv_ref):
    x = src_ref[0].astype(jnp.bfloat16)                              # (s_tile, D)
    y = jnp.dot(x, wqkv_ref[...], preferred_element_type=jnp.float32)
    qkv_ref[0] = (y + bqkv_ref[...]).astype(jnp.bfloat16)            # (s_tile, 3D)


# -----------------------------------------------------------------------------
# Attention (flash over key tiles) + residual + LN1 + FFN + residual + LN2.
# -----------------------------------------------------------------------------
def _make_attn_kernel(nhead: int, dh: int, num_kv: int, has_mask: bool):
    f32 = jnp.float32
    bf16 = jnp.bfloat16

    def kernel(*refs):
        src_ref, q_ref, k_ref, v_ref = refs[:4]
        idx = 4
        mask_ref = None
        if has_mask:
            mask_ref = refs[idx]
            idx += 1
        (wo_ref, bo_ref, w1_ref, b1_ref, w2_ref, b2_ref,
         g1_ref, be1_ref, g2_ref, be2_ref,
         out_ref, m_scr, l_scr, acc_scr, ctx_scr) = refs[idx:]

        kv = pl.program_id(2)

        @pl.when(kv == 0)
        def _init():
            m_scr[...] = jnp.full_like(m_scr, -jnp.inf)
            l_scr[...] = jnp.zeros_like(l_scr)
            acc_scr[...] = jnp.zeros_like(acc_scr)

        if has_mask:
            # Additive bias precomputed in the wrapper (0 / -1e9); one cast per
            # block, hoisted out of the head loop.
            mbias = mask_ref[0].astype(f32)                          # (q_tile, k_tile)

        # Flash-style online softmax.  Static unroll over heads (nhead small);
        # the per-head live set is bounded to (q_tile, k_tile) by key tiling.
        for h in range(nhead):
            qh = q_ref[0, h]                                         # (q_tile, dh) bf16 (pre-scaled by 1/sqrt(dh))
            kh = k_ref[0, h]                                         # (k_tile, dh) bf16
            vh = v_ref[0, h]                                         # (k_tile, dh) bf16
            s = lax.dot_general(qh, kh,                              # (q_tile, k_tile)
                                dimension_numbers=(((1,), (1,)), ((), ())),
                                preferred_element_type=f32)
            if has_mask:
                s = s + mbias
            m_prev = m_scr[h]
            m_new = jnp.maximum(m_prev, jnp.max(s, axis=-1, keepdims=True))
            alpha = jnp.exp(m_prev - m_new)
            p = jnp.exp(s - m_new)
            l_scr[h] = alpha * l_scr[h] + jnp.sum(p, axis=-1, keepdims=True)
            acc_scr[h] = alpha * acc_scr[h] + jnp.dot(
                p.astype(bf16), vh, preferred_element_type=f32)
            m_scr[h] = m_new

        @pl.when(kv == num_kv - 1)
        def _finalize():
            # Concatenate normalized heads into a (q_tile, D) bf16 slab, then one
            # full-contraction output projection against the un-split Wo.
            for h in range(nhead):
                inv_l = pl.reciprocal(l_scr[h], approx=True)         # (q_tile, 1)
                ctx_scr[:, pl.ds(h * dh, dh)] = (acc_scr[h] * inv_l).astype(bf16)
            src2 = jnp.dot(ctx_scr[...], wo_ref[...],
                           preferred_element_type=f32) + bo_ref[...]

            # residual + LayerNorm1 (dropout = identity in eval)
            y = src_ref[0] + src2
            mu = jnp.mean(y, axis=-1, keepdims=True)
            yc = y - mu
            var = jnp.mean(yc * yc, axis=-1, keepdims=True)
            y = yc * lax.rsqrt(var + f32(1e-5)) * g1_ref[...] + be1_ref[...]

            # FFN: Linear -> ReLU -> Linear (bf16 operands, f32 accumulation)
            h1 = jnp.dot(y.astype(bf16), w1_ref[...],
                         preferred_element_type=f32) + b1_ref[...]
            h1 = jnp.maximum(h1, f32(0.0))
            ff = jnp.dot(h1.astype(bf16), w2_ref[...],
                         preferred_element_type=f32) + b2_ref[...]

            # residual + LayerNorm2
            z = y + ff
            mu2 = jnp.mean(z, axis=-1, keepdims=True)
            zc = z - mu2
            var2 = jnp.mean(zc * zc, axis=-1, keepdims=True)
            out_ref[0] = zc * lax.rsqrt(var2 + f32(1e-5)) * g2_ref[...] + be2_ref[...]

    return kernel


# -----------------------------------------------------------------------------
# Tiling helpers.
# -----------------------------------------------------------------------------
def _pick_tile(n, target, granule):
    """Largest multiple of `granule` that divides n and is <= target; else n."""
    if n <= target:
        return n
    t = (target // granule) * granule
    while t >= granule:
        if n % t == 0:
            return t
        t -= granule
    # TODO(synk): pad the sequence (and mask) when S has no suitable divisor
    # instead of falling back to an untiled axis for very long sequences.
    return n


def _valid_tile(n, t, granule):
    return t == n or (t >= granule and t % granule == 0 and n % t == 0)


# -----------------------------------------------------------------------------
# Wrapper.
# -----------------------------------------------------------------------------
def transformer_forward(src, mask, params, nhead, *,
                        q_tile=None, k_tile=None, interpret=False):
    """src: (B, S, D) f32; mask: (B, S, S) binary (1=attend, 0=exclude) or None."""
    src = src.astype(jnp.float32)
    B, S, D = src.shape
    F = params["w1"].shape[1]
    assert D % nhead == 0
    Dh = D // nhead
    has_mask = mask is not None
    bf16, f32 = jnp.bfloat16, jnp.float32

    # --- tiling: q_tile capped at 256 (v7x 64 MiB VMEM; v6e/v5e may pass 512) ---
    if q_tile is None or not _valid_tile(S, q_tile, 8):
        q_tile = _pick_tile(S, 256 if q_tile is None else q_tile, 8)
    # The mask block's LAST dim is k_tile, so with a mask it must be a multiple
    # of 128 (or full S); without a mask only sublane (8) granularity applies.
    k_gran = 128 if has_mask else 8
    if k_tile is None or not _valid_tile(S, k_tile, k_gran):
        k_tile = _pick_tile(S, 512 if k_tile is None else k_tile, k_gran)
    s_tile = _pick_tile(S, 512, 8)
    QT, KT, ST = S // q_tile, S // k_tile, S // s_tile

    # --- weight preprocessing (once per call, negligible) ----------------------
    scale = float(Dh) ** -0.5   # fold score scale into Wq/bq: kernel never scales
    wqkv = jnp.concatenate(
        [params["wq"] * scale, params["wk"], params["wv"]], axis=1).astype(bf16)
    bqkv = jnp.concatenate(
        [params["bq"] * scale, params["bk"], params["bv"]], axis=1).astype(f32)
    wo = params["wo"].astype(bf16)
    bo = params["bo"].astype(f32)
    w1 = params["w1"].astype(bf16)
    b1 = params["b1"].astype(f32)
    w2 = params["w2"].astype(bf16)
    b2 = params["b2"].astype(f32)
    g1, be1 = params["g1"].astype(f32), params["be1"].astype(f32)
    g2, be2 = params["g2"].astype(f32), params["be2"].astype(f32)

    # Safe on all of v5e/v6e/v7x; v6e (128 MiB) could raise this further.
    vmem_cap = 48 * 1024 * 1024

    # --- pre-pass: fused QKV projection ----------------------------------------
    proj_flops = 2 * B * S * D * 3 * D
    proj_bytes = B * S * D * 4 + D * 3 * D * 2 + 3 * D * 4 + B * S * 3 * D * 2
    qkv = pl.pallas_call(
        _qkv_proj_kernel,
        out_shape=jax.ShapeDtypeStruct((B, S, 3 * D), bf16),
        grid_spec=pltpu.PrefetchScalarGridSpec(
            num_scalar_prefetch=0,
            grid=(B, ST),
            in_specs=[
                pl.BlockSpec((1, s_tile, D), lambda b, si: (b, si, 0)),
                pl.BlockSpec((D, 3 * D), lambda b, si: (0, 0)),
                pl.BlockSpec((1, 3 * D), lambda b, si: (0, 0)),
            ],
            out_specs=pl.BlockSpec((1, s_tile, 3 * D), lambda b, si: (b, si, 0)),
        ),
        compiler_params=pltpu.CompilerParams(
            dimension_semantics=("parallel", "parallel"),
            vmem_limit_bytes=vmem_cap),
        cost_estimate=pl.CostEstimate(flops=int(proj_flops), transcendentals=0,
                                      bytes_accessed=int(proj_bytes)),
        interpret=interpret,
    )(src, wqkv, bqkv)

    # Head-major bf16 Q/K/V: (B, nhead, S, Dh).  Layout plumbing only (XLA).
    q, k, v = jnp.split(qkv, 3, axis=-1)

    def head_major(t):
        return t.reshape(B, S, nhead, Dh).transpose(0, 2, 1, 3)

    q, k, v = head_major(q), head_major(k), head_major(v)

    # --- attention + residual + LN + FFN + residual + LN -----------------------
    args = [src, q, k, v]
    in_specs = [
        pl.BlockSpec((1, q_tile, D), lambda b, qi, ki: (b, qi, 0)),           # residual src
        pl.BlockSpec((1, nhead, q_tile, Dh), lambda b, qi, ki: (b, 0, qi, 0)),
        pl.BlockSpec((1, nhead, k_tile, Dh), lambda b, qi, ki: (b, 0, ki, 0)),
        pl.BlockSpec((1, nhead, k_tile, Dh), lambda b, qi, ki: (b, 0, ki, 0)),
    ]
    if has_mask:
        # Additive bias precomputed once in the wrapper, shipped as bf16.
        mbias = jnp.where(mask > 0, 0.0, -1e9).astype(bf16)
        args.append(mbias)
        in_specs.append(
            pl.BlockSpec((1, q_tile, k_tile), lambda b, qi, ki: (b, qi, ki)))

    weights = [wo, bo, w1, b1, w2, b2, g1, be1, g2, be2]
    const2d = lambda b, qi, ki: (0, 0)   # all weights are 2-D, constant index
    in_specs += [pl.BlockSpec(w.shape, const2d) for w in weights]
    args += weights
    # NOTE: constant-index weight blocks could use pipeline_mode=pl.Buffered(1)
    # to halve their VMEM footprint on v7x once that path is verified.

    attn_flops = 4 * B * S * S * D + 2 * B * S * D * D + 4 * B * S * D * F
    transcendentals = B * nhead * S * (S + KT) + 2 * B * S
    attn_bytes = (B * S * D * 4 + 3 * B * S * D * 2
                  + (B * S * S * 2 if has_mask else 0)
                  + sum(int(w.size) * w.dtype.itemsize for w in weights)
                  + B * S * D * 4)

    kernel = _make_attn_kernel(nhead=nhead, dh=Dh, num_kv=KT, has_mask=has_mask)

    return pl.pallas_call(
        kernel,
        out_shape=jax.ShapeDtypeStruct((B, S, D), jnp.float32),
        grid_spec=pltpu.PrefetchScalarGridSpec(
            num_scalar_prefetch=0,
            grid=(B, QT, KT),                    # key axis innermost ("arbitrary")
            in_specs=in_specs,
            out_specs=pl.BlockSpec((1, q_tile, D), lambda b, qi, ki: (b, qi, 0)),
            scratch_shapes=[
                pltpu.VMEM((nhead, q_tile, 1), jnp.float32),    # running max
                pltpu.VMEM((nhead, q_tile, 1), jnp.float32),    # running denom
                pltpu.VMEM((nhead, q_tile, Dh), jnp.float32),   # running context
                pltpu.VMEM((q_tile, D), jnp.bfloat16),          # concatenated heads
            ],
        ),
        compiler_params=pltpu.CompilerParams(
            dimension_semantics=("parallel", "parallel", "arbitrary"),
            vmem_limit_bytes=vmem_cap),
        cost_estimate=pl.CostEstimate(flops=int(attn_flops),
                                      transcendentals=int(transcendentals),
                                      bytes_accessed=int(attn_bytes)),
        interpret=interpret,
    )(*args)


# -----------------------------------------------------------------------------
# Pure-JAX f32 reference (same math as the PyTorch module in eval mode).
# -----------------------------------------------------------------------------
def reference_forward(src, mask, params, nhead):
    B, S, D = src.shape
    Dh = D // nhead
    if mask is None:
        mask = jnp.ones((B, S, S), jnp.float32)
    x = src
    q = x @ params["wq"] + params["bq"]
    k = x @ params["wk"] + params["bk"]
    v = x @ params["wv"] + params["bv"]
    qh = q.reshape(B, S, nhead, Dh).transpose(0, 2, 1, 3)
    kh = k.reshape(B, S, nhead, Dh).transpose(0, 2, 1, 3)
    vh = v.reshape(B, S, nhead, Dh).transpose(0, 2, 1, 3)
    s = jnp.einsum("bhsd,bhtd->bhst", qh, kh) / jnp.sqrt(jnp.float32(Dh))
    s = jnp.where(mask[:, None, :, :] > 0, s, -1e9)
    p = jax.nn.softmax(s, axis=-1)
    ctx = jnp.einsum("bhst,bhtd->bhsd", p, vh).transpose(0, 2, 1, 3).reshape(B, S, D)
    src2 = ctx @ params["wo"] + params["bo"]

    def layernorm(a, g, be):
        mu = jnp.mean(a, -1, keepdims=True)
        var = jnp.mean((a - mu) ** 2, -1, keepdims=True)
        return (a - mu) / jnp.sqrt(var + 1e-5) * g + be

    y = layernorm(x + src2, params["g1"], params["be1"])
    f = jnp.maximum(y @ params["w1"] + params["b1"], 0.0) @ params["w2"] + params["b2"]
    return layernorm(y + f, params["g2"], params["be2"])


def init_params(key, d_model, dim_feedforward):
    """Deterministic PyTorch-Linear-style uniform init."""
    ks = jax.random.split(key, 12)

    def lin(kw, kb, fan_in, fan_out):
        bound = 1.0 / jnp.sqrt(jnp.float32(fan_in))
        w = jax.random.uniform(kw, (fan_in, fan_out), jnp.float32, -bound, bound)
        b = jax.random.uniform(kb, (1, fan_out), jnp.float32, -bound, bound)
        return w, b

    wq, bq = lin(ks[0], ks[1], d_model, d_model)
    wk, bk = lin(ks[2], ks[3], d_model, d_model)
    wv, bv = lin(ks[4], ks[5], d_model, d_model)
    wo, bo = lin(ks[6], ks[7], d_model, d_model)
    w1, b1 = lin(ks[8], ks[9], d_model, dim_feedforward)
    w2, b2 = lin(ks[10], ks[11], dim_feedforward, d_model)
    return dict(
        wq=wq, bq=bq, wk=wk, bk=bk, wv=wv, bv=bv, wo=wo, bo=bo,
        w1=w1, b1=b1, w2=w2, b2=b2,
        g1=jnp.ones((1, d_model), jnp.float32),
        be1=jnp.zeros((1, d_model), jnp.float32),
        g2=jnp.ones((1, d_model), jnp.float32),
        be2=jnp.zeros((1, d_model), jnp.float32),
    )


if __name__ == "__main__":
    key = jax.random.PRNGKey(0)
    (kA_src, kA_par, kB_src, kB_par, kB_msk,
     kD_src, kD_par, kD_msk) = jax.random.split(key, 8)

    # Case A: module-default mask=None, single query/key tile.
    B, S, D, NHEAD, FF = 2, 8, 32, 4, 64
    srcA = jax.random.normal(kA_src, (B, S, D), jnp.float32)
    paramsA = init_params(kA_par, D, FF)
    outA = jax.block_until_ready(transformer_forward(srcA, None, paramsA, NHEAD))
    refA = reference_forward(srcA, None, paramsA, NHEAD)
    assert outA.shape == (B, S, D)
    errA = jnp.max(jnp.abs(outA - refA))
    assert jnp.allclose(outA, refA, atol=5e-2, rtol=5e-2), f"case A max abs err {errA}"

    # Case B: binary mask + query tiling (S=16, q_tile=8 -> QT=2; mask keeps KT=1).
    B2, S2, D2, NHEAD2, FF2 = 2, 16, 32, 2, 48
    srcB = jax.random.normal(kB_src, (B2, S2, D2), jnp.float32)
    paramsB = init_params(kB_par, D2, FF2)
    bern = jax.random.bernoulli(kB_msk, 0.7, (B2, S2, S2)).astype(jnp.float32)
    maskB = jnp.maximum(bern, jnp.eye(S2, dtype=jnp.float32)[None])  # no fully-masked rows
    outB = jax.block_until_ready(
        transformer_forward(srcB, maskB, paramsB, NHEAD2, q_tile=8))
    refB = reference_forward(srcB, maskB, paramsB, NHEAD2)
    errB = jnp.max(jnp.abs(outB - refB))
    assert jnp.allclose(outB, refB, atol=5e-2, rtol=5e-2), f"case B max abs err {errB}"

    # Case C: no mask, query AND key tiling (QT=2, KT=2) -> exercises the
    # flash-style online-softmax accumulation across key tiles.
    outC = jax.block_until_ready(
        transformer_forward(srcB, None, paramsB, NHEAD2, q_tile=8, k_tile=8))
    refC = reference_forward(srcB, None, paramsB, NHEAD2)
    errC = jnp.max(jnp.abs(outC - refC))
    assert jnp.allclose(outC, refC, atol=5e-2, rtol=5e-2), f"case C max abs err {errC}"

    # Case D: mask + 128-granular query/key tiling (QT=2, KT=2), closer to the
    # realistic layout.  Tolerance widened for deeper bf16 contractions + approx
    # reciprocal (intentional precision loss).
    B4, S4, D4, NHEAD4, FF4 = 1, 256, 64, 4, 128
    srcD = jax.random.normal(kD_src, (B4, S4, D4), jnp.float32)
    paramsD = init_params(kD_par, D4, FF4)
    bernD = jax.random.bernoulli(kD_msk, 0.7, (B4, S4, S4)).astype(jnp.float32)
    maskD = jnp.maximum(bernD, jnp.eye(S4, dtype=jnp.float32)[None])
    outD = jax.block_until_ready(
        transformer_forward(srcD, maskD, paramsD, NHEAD4, q_tile=128, k_tile=128))
    refD = reference_forward(srcD, maskD, paramsD, NHEAD4)
    errD = jnp.max(jnp.abs(outD - refD))
    assert jnp.allclose(outD, refD, atol=1e-1, rtol=1e-1), f"case D max abs err {errD}"

    # TODO(synk): dropout is identity (eval mode); learned_residual / return_weights
    # paths are not implemented (module defaults).
    print("KERNEL_OK")
</pallas_src>

<mosaic_0001>
module attributes {stable_mosaic.version = 11 : i64} {
  func.func @_qkv_proj_kernel(%arg0: i32, %arg1: i32, %arg2: memref<1x8x32xf32, #tpu.memory_space<vmem>>, %arg3: memref<32x96xbf16, #tpu.memory_space<vmem>>, %arg4: memref<1x96xf32, #tpu.memory_space<vmem>>, %arg5: memref<1x8x96xbf16, #tpu.memory_space<vmem>>) attributes {dimension_semantics = [#tpu.dimension_semantics<parallel>, #tpu.dimension_semantics<parallel>], iteration_bounds = array<i64: 2, 1>, scalar_prefetch = 0 : i64, scratch_operands = 0 : i64, tpu.core_type = #tpu.core_type<tc>, window_params = [{transform_indices = @transform_0, window_bounds = array<i64: 1, 8, 32>}, {pipeline_mode = #tpu.pipeline_mode<synchronous>, transform_indices = @transform_1, window_bounds = array<i64: 32, 96>}, {pipeline_mode = #tpu.pipeline_mode<synchronous>, transform_indices = @transform_2, window_bounds = array<i64: 1, 96>}, {transform_indices = @transform_3, window_bounds = array<i64: 1, 8, 96>}]} {
    %c0 = arith.constant 0 : index
    %c0_0 = arith.constant 0 : index
    %c0_1 = arith.constant 0 : index
    %0 = vector.load %arg2[%c0, %c0_0, %c0_1] : memref<1x8x32xf32, #tpu.memory_space<vmem>>, vector<1x8x32xf32>
    %1 = vector.shape_cast %0 : vector<1x8x32xf32> to vector<8x32xf32>
    %2 = arith.truncf %1 : vector<8x32xf32> to vector<8x32xbf16>
    %c0_2 = arith.constant 0 : index
    %c0_3 = arith.constant 0 : index
    %3 = vector.load %arg3[%c0_2, %c0_3] : memref<32x96xbf16, #tpu.memory_space<vmem>>, vector<32x96xbf16>
    %cst = arith.constant dense<0.000000e+00> : vector<8x96xf32>
    %4 = tpu.matmul %2, %3, %cst {dimension_numbers = #tpu.dot_dimension_numbers<[1], [0], [0], [1], [0, 0, 1, 1], [], []>} : vector<8x32xbf16>, vector<32x96xbf16>, vector<8x96xf32> -> vector<8x96xf32>
    %c0_4 = arith.constant 0 : index
    %c0_5 = arith.constant 0 : index
    %5 = vector.load %arg4[%c0_4, %c0_5] : memref<1x96xf32, #tpu.memory_space<vmem>>, vector<1x96xf32>
    %6 = vector.broadcast %5 : vector<1x96xf32> to vector<8x96xf32>
    %7 = arith.addf %4, %6 : vector<8x96xf32>
    %8 = arith.truncf %7 : vector<8x96xf32> to vector<8x96xbf16>
    %c0_6 = arith.constant 0 : index
    %c0_7 = arith.constant 0 : index
    %c0_8 = arith.constant 0 : index
    %9 = vector.load %arg5[%c0_6, %c0_7, %c0_8] : memref<1x8x96xbf16, #tpu.memory_space<vmem>>, vector<1x8x96xbf16>
    %10 = vector.shape_cast %9 : vector<1x8x96xbf16> to vector<8x96xbf16>
    %11 = vector.shape_cast %8 : vector<8x96xbf16> to vector<1x8x96xbf16>
    tpu.vector_store %arg5[%c0_6, %c0_7, %c0_8], %11 {strides = array<i32>} : memref<1x8x96xbf16, #tpu.memory_space<vmem>>, vector<1x8x96xbf16>,
    return
  }
  func.func @transform_0(%arg0: i32, %arg1: i32) -> (i32, i32, i32) {
    %c0_i32 = arith.constant 0 : i32
    %c0_i32_0 = arith.constant 0 : i32
    return %arg0, %arg1, %c0_i32 : i32, i32, i32
  }
  func.func @transform_1(%arg0: i32, %arg1: i32) -> (i32, i32) {
    %c0_i32 = arith.constant 0 : i32
    %c0_i32_0 = arith.constant 0 : i32
    %c0_i32_1 = arith.constant 0 : i32
    return %c0_i32, %c0_i32_0 : i32, i32
  }
  func.func @transform_2(%arg0: i32, %arg1: i32) -> (i32, i32) {
    %c0_i32 = arith.constant 0 : i32
    %c0_i32_0 = arith.constant 0 : i32
    %c0_i32_1 = arith.constant 0 : i32
    return %c0_i32, %c0_i32_0 : i32, i32
  }
  func.func @transform_3(%arg0: i32, %arg1: i32) -> (i32, i32, i32) {
    %c0_i32 = arith.constant 0 : i32
    %c0_i32_0 = arith.constant 0 : i32
    return %arg0, %arg1, %c0_i32 : i32, i32, i32
  }
}

</mosaic_0001>

<llo_original>
// kernel: tpu_custom_call.1
$region0: #{tpu_custom_call.1}
  #allocation0 [shape = 'u32[]', space=smem, size = 0x4, offset = 0x4, fixed_abs, tag = 'smem constant byte address 0x4 - core index']
  #allocation1 [shape = 'u32[144,128]{1,0:T(1,128)}', space=vmem, size = 0x12000, scoped, tag = 'internal scratch']
  %s0 = inlined_call_operand.hbm [shape: f32[2,8,32], index: 0, kind: input, shape index: {}]
  %s1 = inlined_call_operand.hbm [shape: bf16[32,96], index: 1, kind: input, shape index: {}]
  %s2 = inlined_call_operand.vmem [shape: f32[1,96], index: 2, kind: input, shape index: {}]
  %s3 = inlined_call_operand.hbm [shape: bf16[2,8,96], index: 3, kind: output, shape index: {}]
  %s4 = sld [smem:[#allocation0]]
  $region53: #{tpu_custom_call.1} parent=0
    _
  %s6 = ssub.s32 1, %s4
  %s7 = scalar_select 0, %s6, %s4
  $region1: #{tpu_custom_call.1} parent=0
    #allocation2 [shape = 'u8[8192]{0}', space=vmem, size = 0x2000, scoped, tag = 'input window, operand 0']
    #allocation3 [shape = 's32[2]{0}', space=sflag, size = 0x8, scoped, tag = 'scoped memory for tpu_custom_call.1']
    #allocation4 [shape = 's32[2]{0}', space=sflag, size = 0x8, scoped, tag = 'scoped memory for tpu_custom_call.1']
    #allocation5 [shape = 'u8[8192]{0}', space=vmem, size = 0x2000, scoped, tag = 'input window, operand 1, single buffered']
    #allocation6 [shape = 's32[1]{0}', space=sflag, size = 0x4, scoped, tag = 'scoped memory for tpu_custom_call.1']
    #allocation7 [shape = 'u8[4096]{0}', space=vmem, size = 0x1000, scoped, tag = 'output window, operand 0']
    %8 = vsyncpa [#allocation3], 0
    %s9 = scalar_lea.sflag [#allocation3], 1
    %10 = vsyncpa %s9, 0
    %11 = vsyncpa [#allocation6], 0
    %12 = vsyncpa [#allocation4], 0
    %s13 = scalar_lea.sflag [#allocation4], 1
    %14 = vsyncpa %s13, 0
    loop: start=0, step=1, limit=4
    $region2: #{tpu_custom_call.1} parent=1 // loop_pre_header
      _
    $region3: #{tpu_custom_call.1} parent=1 // loop_header
      %s16 = sphi 0, %s20
      %p17 = scmp.ge.s32.totalorder %s16, 4
      %s23 = sphi 0, %s35
      %s24 = sphi 0, %s31
      %s25 = sphi 0, %s23
      %s26 = sphi 0, %s24
      %s27 = sphi 0, %s25
      %s28 = sphi 0, %s26
      %s40 = sphi 0, %s42
      %s43 = sphi 0, %s40
      %s44 = sphi 0, %s43
      %s60 = sphi 0, %s44
      %s64 = sphi 0, %s64
      %s66 = sphi 0, %s64
      %s67 = sphi 0, %s66
      %s81 = sphi 0, %s67
      %s85 = sphi 0, %s85
      %s87 = sphi 0, %s85
      %s88 = sphi 0, %s87
      %s102 = sphi 0, %s88
      %s110 = sphi 0, %s112
      %s113 = sphi 0, %s110
      %s114 = sphi 0, %s113
      %s130 = sphi 0, %s114
    $region4: #{tpu_custom_call.1} parent=1 // loop_header_branch
      %19 = sbr.rel (%p17) target = $region8
    $region5: #{tpu_custom_call.1} parent=1 // loop_body
      %s21 = ssub.s32 %s16, 1
      %s22 = ssub.s32 %s16, 2
      %s29 = sadd.s32 1, %s24
      %p30 = scmp.ge.s32.totalorder %s29, 1
      %s31 = scalar_select %p30, 0, %s29
      %s32 = sadd.s32 1, %s23
      %s33 = scalar_select %p30, %s32, %s23
      %p34 = scmp.ge.s32.totalorder %s33, 2
      %s35 = scalar_select %p34, 0, %s33
      %s36 = ssub.s32 %s23, %s35
      %s37 = ssub.s32 %s24, %s31
      %s38 = sor.u32 %s36, %s37
      %p39 = scmp.eq.s32.totalorder %s38, 0
      %s41 = sadd.s32 %s40, 1
      %s42 = scalar_select %p39, %s40, %s41
      %p45 = pneg %p39
      %p46 = scmp.eq.s32.totalorder %s16, 1
      %p47 = por %p45, %p46
      %p48 = scmp.ne.s32.totalorder %s40, %s43
      %p49 = scmp.eq.s32.totalorder %s16, 0
      %p50 = por %p48, %p49
      %p51 = scmp.ne.s32.totalorder %s40, %s43
      %p52 = scmp.eq.s32.totalorder %s21, 1
      %p53 = por %p51, %p52
      %p54 = scmp.ne.s32.totalorder %s43, %s44
      %p55 = scmp.eq.s32.totalorder %s21, 0
      %p56 = por %p54, %p55
      %p57 = scmp.ne.s32.totalorder %s43, %s44
      %p58 = scmp.eq.s32.totalorder %s22, 1
      %p59 = por %p57, %p58
      %p61 = scmp.ne.s32.totalorder %s44, %s60
      %p62 = scmp.eq.s32.totalorder %s22, 0
      %p63 = por %p61, %p62
      %s65 = sadd.s32 %s64, 1
      %p68 = scmp.eq.s32.totalorder %s16, 1
      %p69 = scmp.ne.s32.totalorder %s64, %s66
      %p70 = scmp.eq.s32.totalorder %s16, 0
      %p71 = por %p69, %p70
      %p72 = scmp.ne.s32.totalorder %s64, %s66
      %p73 = scmp.eq.s32.totalorder %s21, 1
      %p74 = por %p72, %p73
      %p75 = scmp.ne.s32.totalorder %s66, %s67
      %p76 = scmp.eq.s32.totalorder %s21, 0
      %p77 = por %p75, %p76
      %p78 = scmp.ne.s32.totalorder %s66, %s67
      %p79 = scmp.eq.s32.totalorder %s22, 1
      %p80 = por %p78, %p79
      %p82 = scmp.ne.s32.totalorder %s67, %s81
      %p83 = scmp.eq.s32.totalorder %s22, 0
      %p84 = por %p82, %p83
      %s86 = sadd.s32 %s85, 1
      %p89 = scmp.eq.s32.totalorder %s16, 1
      %p90 = scmp.ne.s32.totalorder %s85, %s87
      %p91 = scmp.eq.s32.totalorder %s16, 0
      %p92 = por %p90, %p91
      %p93 = scmp.ne.s32.totalorder %s85, %s87
      %p94 = scmp.eq.s32.totalorder %s21, 1
      %p95 = por %p93, %p94
      %p96 = scmp.ne.s32.totalorder %s87, %s88
      %p97 = scmp.eq.s32.totalorder %s21, 0
      %p98 = por %p96, %p97
      %p99 = scmp.ne.s32.totalorder %s87, %s88
      %p100 = scmp.eq.s32.totalorder %s22, 1
      %p101 = por %p99, %p100
      %p103 = scmp.ne.s32.totalorder %s88, %s102
      %p104 = scmp.eq.s32.totalorder %s22, 0
      %p105 = por %p103, %p104
      %s106 = ssub.s32 %s23, %s35
      %s107 = ssub.s32 %s24, %s31
      %s108 = sor.u32 %s106, %s107
      %p109 = scmp.eq.s32.totalorder %s108, 0
      %s111 = sadd.s32 %s110, 1
      %s112 = scalar_select %p109, %s110, %s111
      %p115 = pneg %p109
      %p116 = scmp.eq.s32.totalorder %s16, 1
      %p117 = por %p115, %p116
      %p118 = scmp.ne.s32.totalorder %s110, %s113
      %p119 = scmp.eq.s32.totalorder %s16, 0
      %p120 = por %p118, %p119
      %p121 = scmp.ne.s32.totalorder %s110, %s113
      %p122 = scmp.eq.s32.totalorder %s21, 1
      %p123 = por %p121, %p122
      %p124 = scmp.ne.s32.totalorder %s113, %s114
      %p125 = scmp.eq.s32.totalorder %s21, 0
      %p126 = por %p124, %p125
      %p127 = scmp.ne.s32.totalorder %s113, %s114
      %p128 = scmp.eq.s32.totalorder %s22, 1
      %p129 = por %p127, %p128
      %p131 = scmp.ne.s32.totalorder %s114, %s130
      %p132 = scmp.eq.s32.totalorder %s22, 0
      %p133 = por %p131, %p132
      %p134 = scmp.le.s32.totalorder 1, %s16
      %p135 = scmp.lt.s32.totalorder %s16, 3
      %p136 = pnand %p134, %p135
      %p137 = pneg %p136
      // Predicated region
      $region9: #{tpu_custom_call.1} parent=5 // pred_check
        _
      $region10: #{tpu_custom_call.1} parent=5 // pred_check_branch
        %139 = sbr.rel (%p136) target = $region12
      $region11: #{tpu_custom_call.1} parent=5 // pred_region
        %s140 = ssub.s32 %s16, 1
        // Predicated region
        $region13: #{tpu_custom_call.1} parent=11 // pred_check
          %p141 = pneg %p77
        $region14: #{tpu_custom_call.1} parent=11 // pred_check_branch
          %143 = sbr.rel (%p141) target = $region16
        $region15: #{tpu_custom_call.1} parent=11 // pred_region
          %s145 = ssub.s32 256, 256
          %146 = vsyncadd [#allocation6], %s145
          %s147 = sshll.u32 [#allocation5], 4
          %s148 = int_to_ptr.vmem [resolvable:$true] %s147
          %153 = dma.hbm_to_vmem [thread:$0]  %s1, 256, %s148, [#allocation6], 64, 64, 4
        $region16: #{tpu_custom_call.1} parent=11 // pred_fallthru
          _
        // Predicated region
        $region17: #{tpu_custom_call.1} parent=11 // pred_check
          %p154 = pneg %p98
        $region18: #{tpu_custom_call.1} parent=11 // pred_check_branch
          %156 = sbr.rel (%p154) target = $region20
        $region19: #{tpu_custom_call.1} parent=11 // pred_region
          _
        $region20: #{tpu_custom_call.1} parent=11 // pred_fallthru
          _
      $region12: #{tpu_custom_call.1} parent=5 // pred_fallthru
        _
      %p157 = scmp.lt.s32.totalorder %s16, 2
      // Predicated region
      $region21: #{tpu_custom_call.1} parent=5 // pred_check
        %p158 = pneg %p157
      $region22: #{tpu_custom_call.1} parent=5 // pred_check_branch
        %160 = sbr.rel (%p158) target = $region24
      $region23: #{tpu_custom_call.1} parent=5 // pred_region
        // Predicated region
        $region25: #{tpu_custom_call.1} parent=23 // pred_check
          %p161 = pneg %p50
        $region26: #{tpu_custom_call.1} parent=23 // pred_check_branch
          %163 = sbr.rel (%p161) target = $region28
        $region27: #{tpu_custom_call.1} parent=23 // pred_region
          %s164 = sand.u32 %s40, 1
          %s165 = scalar_lea.sflag [#allocation3], %s164
          %s166 = sand.u32 %s40, 1
          %s167 = smul.addr %s166, 8
          %s168 = scalar_lea.vmem [#allocation2], %s167
          %s170 = ssub.s32 128, 128
          %171 = vsyncadd %s165, %s170
          %s172 = sadd.s32 %s24, %s23
          %s173 = smul.addr %s172, 128
          %s174 = scalar_lea.hbm %s0, %s173
          %s176 = sshll.u32 %s168, 4
          %s177 = int_to_ptr.vmem [resolvable:$true] %s176
          %179 = dma.hbm_to_vmem [thread:$0]  %s174, 128, %s177, %s165
        $region28: #{tpu_custom_call.1} parent=23 // pred_fallthru
          _
      $region24: #{tpu_custom_call.1} parent=5 // pred_fallthru
        _
      %p180 = scmp.le.s32.totalorder 1, %s16
      %p181 = scmp.lt.s32.totalorder %s16, 3
      %p182 = pnand %p180, %p181
      %p183 = pneg %p182
      // Predicated region
      $region29: #{tpu_custom_call.1} parent=5 // pred_check
        _
      $region30: #{tpu_custom_call.1} parent=5 // pred_check_branch
        %185 = sbr.rel (%p182) target = $region32
      $region31: #{tpu_custom_call.1} parent=5 // pred_region
        %s186 = ssub.s32 %s16, 1
        %s187 = sand.u32 %s43, 1
        %s188 = scalar_lea.sflag [#allocation3], %s187
        %s189 = sand.u32 %s43, 1
        %s190 = smul.addr %s189, 8
        %s191 = scalar_lea.vmem [#allocation2], %s190
        // Predicated region
        $region33: #{tpu_custom_call.1} parent=31 // pred_check
          %p192 = pneg %p56
        $region34: #{tpu_custom_call.1} parent=31 // pred_check_branch
          %194 = sbr.rel (%p192) target = $region36
        $region35: #{tpu_custom_call.1} parent=31 // pred_region
          %195 = dma.done %s188, 128
        $region36: #{tpu_custom_call.1} parent=31 // pred_fallthru
          _
        // Predicated region
        $region37: #{tpu_custom_call.1} parent=31 // pred_check
          %p196 = pneg %p77
        $region38: #{tpu_custom_call.1} parent=31 // pred_check_branch
          %198 = sbr.rel (%p196) target = $region40
        $region39: #{tpu_custom_call.1} parent=31 // pred_region
          %199 = dma.done [#allocation6], 256
        $region40: #{tpu_custom_call.1} parent=31 // pred_fallthru
          _
        %s200 = sand.u32 %s43, 1
        %s201 = scalar_lea.sflag [#allocation3], %s200
        %s202 = sand.u32 %s43, 1
        %s203 = smul.addr %s202, 8
        %s204 = scalar_lea.vmem [#allocation2], %s203
        %p205 = pneg %p56
        %p206 = pneg %p53
        %p207 = pneg %p77
        %p208 = pneg %p74
        %p209 = pneg %p98
        %p210 = pneg %p95
        %p211 = pneg %p126
        %p212 = pneg %p123
        %s213 = sand.u32 %s113, 1
        %s214 = scalar_lea.sflag [#allocation4], %s213
        %s215 = sand.u32 %s113, 1
        %s216 = smul.addr %s215, 4
        %s217 = scalar_lea.vmem [#allocation7], %s216
        %v219 = vld [vmem:[%s191] sm:$0xff]
        %v220 = vpack.c.bf16 %v219, %v219
        %v221 = vld [vmem:[#allocation5] sm:$0xf]
        %v222 = vld [vmem:[#allocation5 + $0x4] sm:$0xf]
        %v223 = vld [vmem:[#allocation5 + $0x8] sm:$0xf]
        %v224 = vld [vmem:[#allocation5 + $0xc] sm:$0xf]
        %v225 = vld [vmem:[%s2] sm:$0x1]
        %v227 = vlaneseq
        %v228 = vshrl.u32 %v227, 7
        %v229 = vsub.s32 0, %v228
        %v230 = vrot.slane %v225, %v229
        %v236 = vunpack.c.l.b16 %v221
        %v237 = vunpack.c.l.b16 %v222
        %v238 = vunpack.c.l.b16 %v223
        %v239 = vunpack.c.l.b16 %v224
        %v240 = vpack.c.b16 %v237, %v236
        %v241 = vpack.c.b16 %v239, %v238
        %vm244 = vcmask 261120
        %v246 = vsel %vm244, %v220, 0
        %248 = vmatprep.subr.bf16.mxu0 0
        %249 = vmatpush1.bf16.msra.mxu0 0
        %250 = vmatprep.subr.bf16.mxu0 0
        %251 = vmatpush1.bf16.msra.mxu0 0
        %252 = vmatprep.subr.bf16.mxu0 0
        %253 = vmatpush1.bf16.msra.mxu0 0
        %254 = vmatprep.subr.bf16.mxu0 0
        %255 = vmatpush1.bf16.msra.mxu0 0
        %256 = vmatprep.subr.bf16.mxu0 0
        %257 = vmatpush1.bf16.msra.mxu0 0
        %258 = vmatprep.subr.bf16.mxu0 0
        %259 = vmatpush1.bf16.msra.mxu0 0
        %260 = vmatprep.subr.bf16.mxu0 0
        %261 = vmatpush1.bf16.msra.mxu0 %v241
        %262 = vmatprep.subr.bf16.mxu0 0
        %263 = vmatpush1.bf16.msra.mxu0 %v240
        %264 = vmatprep.subr.bf16.mxu0 0
        %265 = vmatpush2.bf16.msra.mxu0 0
        %266 = vmatprep.subr.bf16.mxu0 0
        %267 = vmatpush2.bf16.msra.mxu0 0
        %268 = vmatprep.subr.bf16.mxu0 0
        %269 = vmatpush2.bf16.msra.mxu0 0
        %270 = vmatprep.subr.bf16.mxu0 0
        %271 = vmatpush2.bf16.msra.mxu0 0
        %272 = vmatprep.subr.bf16.mxu0 0
        %273 = vmatpush2.bf16.msra.mxu0 0
        %274 = vmatprep.subr.bf16.mxu0 0
        %275 = vmatpush2.bf16.msra.mxu0 0
        %276 = vmatprep.subr.bf16.mxu0 0
        %277 = vmatpush2.bf16.msra.mxu0 0
        %278 = vmatprep.subr.bf16.mxu0 0
        %279 = vmatpush2.bf16.msra.mxu0 0
        %280 = vmatprep.mubr.bf16.mxu0 0
        %281 = vmatmul.mubr.bf16.gmra.mxu0 %v246
        %v282 = vpop.f32.mrf.mxu0
        %v283 = vadd.f32 %v230, %v282
        %v284 = vpop.f32.mrf.mxu0
        %v285 = vpop.f32.mrf.mxu0
        %v286 = vpop.f32.mrf.mxu0
        %287 = vdwg.mxu0
        %v288 = vpack.c.bf16 %v283, %v283
        %vm289 = vcmask 781312
        %290 = vst.msk [vmem:[%s217] sm:$0xf] %vm289, %v288
        %s291 = sand.u32 %s113, 1
        %s292 = scalar_lea.sflag [#allocation4], %s291
        %s293 = sand.u32 %s113, 1
        %s294 = smul.addr %s293, 4
        %s295 = scalar_lea.vmem [#allocation7], %s294
        // Predicated region
        $region41: #{tpu_custom_call.1} parent=31 // pred_check
          %p296 = pneg %p123
        $region42: #{tpu_custom_call.1} parent=31 // pred_check_branch
          %298 = sbr.rel (%p296) target = $region44
        $region43: #{tpu_custom_call.1} parent=31 // pred_region
          %s300 = ssub.s32 64, 64
          %301 = vsyncadd %s292, %s300
          %s302 = sadd.s32 %s26, %s25
          %s303 = smul.addr %s302, 64
          %s304 = scalar_lea.hbm %s3, %s303
          %s306 = sshll.u32 %s295, 4
          %s307 = int_to_ptr.vmem [resolvable:$true] %s306
          %309 = dma.vmem_to_hbm [thread:$0]  %s307, 64, %s304, %s292
        $region44: #{tpu_custom_call.1} parent=31 // pred_fallthru
          _
      $region32: #{tpu_custom_call.1} parent=5 // pred_fallthru
        _
      %p310 = scmp.le.s32.totalorder 2, %s16
      // Predicated region
      $region45: #{tpu_custom_call.1} parent=5 // pred_check
        %p311 = pneg %p310
      $region46: #{tpu_custom_call.1} parent=5 // pred_check_branch
        %313 = sbr.rel (%p311) target = $region48
      $region47: #{tpu_custom_call.1} parent=5 // pred_region
        %s314 = ssub.s32 %s16, 2
        // Predicated region
        $region49: #{tpu_custom_call.1} parent=47 // pred_check
          %p315 = pneg %p129
        $region50: #{tpu_custom_call.1} parent=47 // pred_check_branch
          %317 = sbr.rel (%p315) target = $region52
        $region51: #{tpu_custom_call.1} parent=47 // pred_region
          %s318 = sand.u32 %s114, 1
          %s319 = scalar_lea.sflag [#allocation4], %s318
          %s320 = sand.u32 %s114, 1
          %s321 = smul.addr %s320, 4
          %s322 = scalar_lea.vmem [#allocation7], %s321
          %323 = dma.done %s319, 64
        $region52: #{tpu_custom_call.1} parent=47 // pred_fallthru
          _
      $region48: #{tpu_custom_call.1} parent=5 // pred_fallthru
        _
    $region6: #{tpu_custom_call.1} parent=1 // loop_footer
      %s20 = sadd.s32 1, %s16
    $region7: #{tpu_custom_call.1} parent=1 // loop_footer_branch
      %15 = sbr.rel target = $region3
    $region8: #{tpu_custom_call.1} parent=1 // loop_exit
      _
    %324 = vsyncpa [#allocation3], 1
    %s325 = scalar_lea.sflag [#allocation3], 1
    %326 = vsyncpa %s325, 1
    %327 = vsyncpa [#allocation6], 1
    %328 = vsyncpa [#allocation4], 1
    %s329 = scalar_lea.sflag [#allocation4], 1
    %330 = vsyncpa %s329, 1

</llo_original>
